<compile_context>
chip_gen: v5e
topology: v5e:2x2
jax: 0.10.0
libtpu: 0.0.40
codegen_flags: <defaults>
</compile_context>

<pallas_src>
import jax
import jax.numpy as jnp
from jax.experimental import pallas as pl
from jax.experimental.pallas import tpu as pltpu

LANE = 128


def _round_up(x, m):
    return ((x + m - 1) // m) * m


def _vmem_capacity_bytes():
    try:
        cap = int(pltpu.get_tpu_info().vmem_capacity_bytes)
        if cap > 0:
            return cap
    except Exception:
        pass
    return 64 * 1024 * 1024  # conservative fallback: v7x per-TensorCore VMEM


def _num_tensorcores():
    try:
        kind = jax.devices()[0].device_kind.lower()
        if "v7" in kind:  # v7x: 2 TensorCores per chip
            return 2
    except Exception:
        pass
    return 1  # v5e / v6e: 1 TensorCore per chip


# ----------------------------------------------------------------------------
# Kernel: grid = (M_tiles, K_tiles).  K streams W1 into an f32 accumulator;
# ReLU + the second (small) matmul run only on the last K step.
# ----------------------------------------------------------------------------
def mlp_head_kernel(x_ref, w1_ref, b1_ref, w2_ref, b2_ref, o_ref, h_acc):
    k = pl.program_id(1)

    @pl.when(k == 0)
    def _():
        h_acc[...] = jnp.zeros_like(h_acc)

    # First linear: bf16 MXU matmul, f32 accumulation.
    h_acc[...] += jnp.dot(x_ref[...], w1_ref[...],
                          preferred_element_type=jnp.float32)

    @pl.when(k == pl.num_programs(1) - 1)
    def _():
        # Bias + ReLU in f32 (VPU).
        h = jnp.maximum(h_acc[...] + b1_ref[...], 0.0)
        # Dropout(p=0.4): identity in eval mode.
        # TODO(synk): training-mode dropout would use pltpu.prng_seed + prng_random_bits.
        o = jnp.dot(h.astype(w2_ref.dtype), w2_ref[...],
                    preferred_element_type=jnp.float32) + b2_ref[...]
        o_ref[...] = o.astype(o_ref.dtype)


# ----------------------------------------------------------------------------
# One-time parameter preparation (padding + bf16 cast hoisted out of the
# per-forward path).
# ----------------------------------------------------------------------------
def prepare_mlp_head_params(w1_t, b1, w2_t, b2, *, compute_dtype=jnp.bfloat16):
    """w1_t: [in_dim, hidden]; b1: [hidden] or [1, hidden];
    w2_t: [hidden, n_classes]; b2: [n_classes] or [1, n_classes]."""
    in_dim, hidden = w1_t.shape
    n_classes = w2_t.shape[1]
    in_dim_p = _round_up(in_dim, LANE)
    hidden_p = _round_up(hidden, LANE)
    ncls_p = _round_up(n_classes, LANE)

    # Zero-padded rows/cols are exact: relu(x@0 + 0) = 0 and 0@W2 + 0 = 0.
    w1_p = jnp.pad(w1_t, ((0, in_dim_p - in_dim),
                          (0, hidden_p - hidden))).astype(compute_dtype)
    b1_p = jnp.pad(jnp.reshape(b1, (1, -1)),
                   ((0, 0), (0, hidden_p - hidden))).astype(jnp.float32)
    w2_p = jnp.pad(w2_t, ((0, hidden_p - hidden),
                          (0, ncls_p - n_classes))).astype(compute_dtype)
    b2_p = jnp.pad(jnp.reshape(b2, (1, -1)),
                   ((0, 0), (0, ncls_p - n_classes))).astype(jnp.float32)

    meta = dict(in_dim=in_dim, hidden=hidden, n_classes=n_classes,
                in_dim_p=in_dim_p, hidden_p=hidden_p, ncls_p=ncls_p,
                compute_dtype=compute_dtype)
    return (w1_p, b1_p, w2_p, b2_p), meta


def _choose_tiles(B, in_dim_p, hidden_p, ncls_p, cdt_bytes, out_bytes,
                  num_tc, tm_max):
    cap = _vmem_capacity_bytes()
    budget = int(cap * 0.7)

    tm = min(tm_max, _round_up(B, 16))
    tm = max(16, _round_up(tm, 16))

    # 2-TC chips (v7x): make sure the "parallel" M axis has >= num_tc programs.
    if num_tc > 1 and B >= 16 * num_tc:
        while -(-B // tm) < num_tc and tm > 16:
            tm = max(16, _round_up(tm // 2, 16))

    tk = in_dim_p  # whole K if it fits -> K axis collapses to one step

    def footprint(tm_, tk_):
        resident = (hidden_p * ncls_p * cdt_bytes            # W2 (single-buffered)
                    + (hidden_p + ncls_p) * 4)                # biases (f32)
        w1_bufs = 2 if tk_ < in_dim_p else 1                  # streamed vs resident
        return (resident
                + w1_bufs * tk_ * hidden_p * cdt_bytes        # W1 block(s)
                + 2 * tm_ * tk_ * cdt_bytes                   # x tile (double-buffered)
                + 2 * tm_ * ncls_p * out_bytes                # out tile (double-buffered)
                + tm_ * hidden_p * 4)                         # f32 h accumulator

    # Shrink tk first (stream W1) -- keeps the big M tile; then shrink tm.
    while footprint(tm, tk) > budget and tk > 128:
        tk = max(128, _round_up(tk // 2, 128))
    while footprint(tm, tk) > budget and tm > 16:
        tm = max(16, _round_up(tm // 2, 16))

    fp = footprint(tm, tk)
    vmem_limit = int(min(cap, max(fp + (8 << 20), 32 << 20)))
    return tm, tk, vmem_limit


# ----------------------------------------------------------------------------
# Forward pass.
# ----------------------------------------------------------------------------
def mlp_head(x, params, meta, *, tm_max=512, unpad_output=True):
    """x: [B, in_dim] (any float dtype); params/meta from prepare_mlp_head_params."""
    w1_p, b1_p, w2_p, b2_p = params
    in_dim = meta["in_dim"]
    n_classes = meta["n_classes"]
    in_dim_p = meta["in_dim_p"]
    hidden_p = meta["hidden_p"]
    ncls_p = meta["ncls_p"]
    compute_dtype = meta["compute_dtype"]

    B = x.shape[0]
    out_dtype = x.dtype
    cdt_bytes = jnp.dtype(compute_dtype).itemsize
    out_bytes = jnp.dtype(out_dtype).itemsize

    tm, tk, vmem_limit = _choose_tiles(
        B, in_dim_p, hidden_p, ncls_p, cdt_bytes, out_bytes,
        _num_tensorcores(), tm_max)

    B_pad = _round_up(B, tm)
    x_p = jnp.pad(x, ((0, B_pad - B), (0, in_dim_p - in_dim))).astype(compute_dtype)

    m_tiles = B_pad // tm
    k_tiles = in_dim_p // tk
    grid = (m_tiles, k_tiles)

    # W1 is resident (single-buffered) when the K axis is trivial, otherwise
    # streamed with default double-buffering so DMA overlaps the MXU.
    if k_tiles == 1:
        w1_spec = pl.BlockSpec((tk, hidden_p), lambda i, k: (k, 0),
                               pipeline_mode=pl.Buffered(1))
    else:
        w1_spec = pl.BlockSpec((tk, hidden_p), lambda i, k: (k, 0))

    flops = 2 * B_pad * (in_dim_p * hidden_p + hidden_p * ncls_p)
    bytes_accessed = (x_p.size * cdt_bytes
                      + w1_p.size * cdt_bytes + w2_p.size * cdt_bytes
                      + (b1_p.size + b2_p.size) * 4
                      + B_pad * ncls_p * out_bytes)

    out_p = pl.pallas_call(
        mlp_head_kernel,
        out_shape=jax.ShapeDtypeStruct((B_pad, ncls_p), out_dtype),
        grid_spec=pltpu.PrefetchScalarGridSpec(
            num_scalar_prefetch=0,
            grid=grid,
            in_specs=[
                pl.BlockSpec((tm, tk), lambda i, k: (i, k)),          # x row/K tile
                w1_spec,                                              # W1^T block
                pl.BlockSpec((1, hidden_p), lambda i, k: (0, 0),
                             pipeline_mode=pl.Buffered(1)),           # b1 (f32)
                pl.BlockSpec((hidden_p, ncls_p), lambda i, k: (0, 0),
                             pipeline_mode=pl.Buffered(1)),           # W2^T (resident)
                pl.BlockSpec((1, ncls_p), lambda i, k: (0, 0),
                             pipeline_mode=pl.Buffered(1)),           # b2 (f32)
            ],
            out_specs=pl.BlockSpec((tm, ncls_p), lambda i, k: (i, 0)),  # lane-dense out
            scratch_shapes=[pltpu.VMEM((tm, hidden_p), jnp.float32)],   # h accumulator
        ),
        compiler_params=pltpu.CompilerParams(
            dimension_semantics=("parallel", "arbitrary"),
            vmem_limit_bytes=vmem_limit),
        cost_estimate=pl.CostEstimate(
            flops=flops, transcendentals=0, bytes_accessed=bytes_accessed),
    )(x_p, w1_p, b1_p, w2_p, b2_p)

    if not unpad_output:
        return out_p  # caller consumes the (B_pad, ncls_p) lane-dense slab
    return out_p[:B, :n_classes]


def reference_mlp_head(x, w1_t, b1, w2_t, b2, compute_dtype=jnp.bfloat16):
    # Matches the kernel numerics: bf16 matmul operands, f32 accumulation/bias/ReLU.
    h = jnp.dot(x.astype(compute_dtype), w1_t.astype(compute_dtype),
                preferred_element_type=jnp.float32) + jnp.reshape(b1, (1, -1))
    h = jnp.maximum(h, 0.0)
    return jnp.dot(h.astype(compute_dtype), w2_t.astype(compute_dtype),
                   preferred_element_type=jnp.float32) + jnp.reshape(b2, (1, -1))


if __name__ == "__main__":
    key = jax.random.PRNGKey(0)
    batch, in_dim, n_classes = 16, 32, 8
    hidden = in_dim // 2

    kx, k1, kb1, k2, kb2 = jax.random.split(key, 5)
    x = jax.random.normal(kx, (batch, in_dim), dtype=jnp.float32)
    # PyTorch layout: W1 (hidden, in_dim), W2 (cls, hidden) -- stored transposed here.
    w1_t = jax.random.normal(k1, (in_dim, hidden), dtype=jnp.float32) * 0.1
    b1 = jax.random.normal(kb1, (1, hidden), dtype=jnp.float32) * 0.1
    w2_t = jax.random.normal(k2, (hidden, n_classes), dtype=jnp.float32) * 0.1
    b2 = jax.random.normal(kb2, (1, n_classes), dtype=jnp.float32) * 0.1

    # Pad/cast the weights once (init-time), then run the fused forward.
    params, meta = prepare_mlp_head_params(w1_t, b1, w2_t, b2)
    out = mlp_head(x, params, meta)
    out = jax.block_until_ready(out)

    ref = reference_mlp_head(x, w1_t, b1, w2_t, b2)
    assert out.shape == (batch, n_classes)
    assert jnp.allclose(out, ref, atol=1e-2, rtol=1e-2)
    print("KERNEL_OK")
</pallas_src>

<mosaic_0001>
module attributes {stable_mosaic.version = 11 : i64} {
  func.func @mlp_head_kernel(%arg0: i32, %arg1: i32, %arg2: memref<16x128xbf16, #tpu.memory_space<vmem>>, %arg3: memref<128x128xbf16, #tpu.memory_space<vmem>>, %arg4: memref<1x128xf32, #tpu.memory_space<vmem>>, %arg5: memref<128x128xbf16, #tpu.memory_space<vmem>>, %arg6: memref<1x128xf32, #tpu.memory_space<vmem>>, %arg7: memref<16x128xf32, #tpu.memory_space<vmem>>, %arg8: memref<16x128xf32, #tpu.memory_space<vmem>>) attributes {dimension_semantics = [#tpu.dimension_semantics<parallel>, #tpu.dimension_semantics<arbitrary>], iteration_bounds = array<i64: 1, 1>, scalar_prefetch = 0 : i64, scratch_operands = 1 : i64, tpu.core_type = #tpu.core_type<tc>, window_params = [{transform_indices = @transform_0, window_bounds = array<i64: 16, 128>}, {pipeline_mode = #tpu.pipeline_mode<synchronous>, transform_indices = @transform_1, window_bounds = array<i64: 128, 128>}, {pipeline_mode = #tpu.pipeline_mode<synchronous>, transform_indices = @transform_2, window_bounds = array<i64: 1, 128>}, {pipeline_mode = #tpu.pipeline_mode<synchronous>, transform_indices = @transform_3, window_bounds = array<i64: 128, 128>}, {pipeline_mode = #tpu.pipeline_mode<synchronous>, transform_indices = @transform_4, window_bounds = array<i64: 1, 128>}, {transform_indices = @transform_5, window_bounds = array<i64: 16, 128>}]} {
    %c0_i32 = arith.constant 0 : i32
    %0 = arith.cmpi eq, %arg1, %c0_i32 : i32
    %1 = arith.extui %0 : i1 to i32
    %c0_i32_0 = arith.constant 0 : i32
    %2 = arith.cmpi ne, %1, %c0_i32_0 : i32
    scf.if %2 {
      %cst_10 = arith.constant 0.000000e+00 : f32
      %12 = vector.broadcast %cst_10 : f32 to vector<16x128xf32>
      %c0_11 = arith.constant 0 : index
      %c0_12 = arith.constant 0 : index
      %13 = vector.load %arg8[%c0_11, %c0_12] : memref<16x128xf32, #tpu.memory_space<vmem>>, vector<16x128xf32>
      tpu.vector_store %arg8[%c0_11, %c0_12], %12 {strides = array<i32>} : memref<16x128xf32, #tpu.memory_space<vmem>>, vector<16x128xf32>,
    } else {
    }
    %c0 = arith.constant 0 : index
    %c0_1 = arith.constant 0 : index
    %3 = vector.load %arg8[%c0, %c0_1] : memref<16x128xf32, #tpu.memory_space<vmem>>, vector<16x128xf32>
    %c0_2 = arith.constant 0 : index
    %c0_3 = arith.constant 0 : index
    %4 = vector.load %arg2[%c0_2, %c0_3] : memref<16x128xbf16, #tpu.memory_space<vmem>>, vector<16x128xbf16>
    %c0_4 = arith.constant 0 : index
    %c0_5 = arith.constant 0 : index
    %5 = vector.load %arg3[%c0_4, %c0_5] : memref<128x128xbf16, #tpu.memory_space<vmem>>, vector<128x128xbf16>
    %cst = arith.constant dense<0.000000e+00> : vector<16x128xf32>
    %6 = tpu.matmul %4, %5, %cst {dimension_numbers = #tpu.dot_dimension_numbers<[1], [0], [0], [1], [0, 0, 1, 1], [], []>} : vector<16x128xbf16>, vector<128x128xbf16>, vector<16x128xf32> -> vector<16x128xf32>
    %7 = arith.addf %3, %6 : vector<16x128xf32>
    %c0_6 = arith.constant 0 : index
    %c0_7 = arith.constant 0 : index
    %8 = vector.load %arg8[%c0_6, %c0_7] : memref<16x128xf32, #tpu.memory_space<vmem>>, vector<16x128xf32>
    tpu.vector_store %arg8[%c0_6, %c0_7], %7 {strides = array<i32>} : memref<16x128xf32, #tpu.memory_space<vmem>>, vector<16x128xf32>,
    %c0_i32_8 = arith.constant 0 : i32
    %9 = arith.cmpi eq, %arg1, %c0_i32_8 : i32
    %10 = arith.extui %9 : i1 to i32
    %c0_i32_9 = arith.constant 0 : i32
    %11 = arith.cmpi ne, %10, %c0_i32_9 : i32
    scf.if %11 {
      %c0_10 = arith.constant 0 : index
      %c0_11 = arith.constant 0 : index
      %12 = vector.load %arg8[%c0_10, %c0_11] : memref<16x128xf32, #tpu.memory_space<vmem>>, vector<16x128xf32>
      %c0_12 = arith.constant 0 : index
      %c0_13 = arith.constant 0 : index
      %13 = vector.load %arg4[%c0_12, %c0_13] : memref<1x128xf32, #tpu.memory_space<vmem>>, vector<1x128xf32>
      %14 = vector.broadcast %13 : vector<1x128xf32> to vector<16x128xf32>
      %15 = arith.addf %12, %14 : vector<16x128xf32>
      %cst_14 = arith.constant 0.000000e+00 : f32
      %16 = vector.broadcast %cst_14 : f32 to vector<16x128xf32>
      %17 = arith.maximumf %15, %16 : vector<16x128xf32>
      %18 = arith.truncf %17 : vector<16x128xf32> to vector<16x128xbf16>
      %c0_15 = arith.constant 0 : index
      %c0_16 = arith.constant 0 : index
      %19 = vector.load %arg5[%c0_15, %c0_16] : memref<128x128xbf16, #tpu.memory_space<vmem>>, vector<128x128xbf16>
      %cst_17 = arith.constant dense<0.000000e+00> : vector<16x128xf32>
      %20 = tpu.matmul %18, %19, %cst_17 {dimension_numbers = #tpu.dot_dimension_numbers<[1], [0], [0], [1], [0, 0, 1, 1], [], []>} : vector<16x128xbf16>, vector<128x128xbf16>, vector<16x128xf32> -> vector<16x128xf32>
      %c0_18 = arith.constant 0 : index
      %c0_19 = arith.constant 0 : index
      %21 = vector.load %arg6[%c0_18, %c0_19] : memref<1x128xf32, #tpu.memory_space<vmem>>, vector<1x128xf32>
      %22 = vector.broadcast %21 : vector<1x128xf32> to vector<16x128xf32>
      %23 = arith.addf %20, %22 : vector<16x128xf32>
      %c0_20 = arith.constant 0 : index
      %c0_21 = arith.constant 0 : index
      %24 = vector.load %arg7[%c0_20, %c0_21] : memref<16x128xf32, #tpu.memory_space<vmem>>, vector<16x128xf32>
      tpu.vector_store %arg7[%c0_20, %c0_21], %23 {strides = array<i32>} : memref<16x128xf32, #tpu.memory_space<vmem>>, vector<16x128xf32>,
    } else {
    }
    return
  }
  func.func @transform_0(%arg0: i32, %arg1: i32) -> (i32, i32) {
    %c0_i32 = arith.constant 0 : i32
    return %arg0, %arg1 : i32, i32
  }
  func.func @transform_1(%arg0: i32, %arg1: i32) -> (i32, i32) {
    %c0_i32 = arith.constant 0 : i32
    %c0_i32_0 = arith.constant 0 : i32
    return %arg1, %c0_i32 : i32, i32
  }
  func.func @transform_2(%arg0: i32, %arg1: i32) -> (i32, i32) {
    %c0_i32 = arith.constant 0 : i32
    %c0_i32_0 = arith.constant 0 : i32
    %c0_i32_1 = arith.constant 0 : i32
    return %c0_i32, %c0_i32_0 : i32, i32
  }
  func.func @transform_3(%arg0: i32, %arg1: i32) -> (i32, i32) {
    %c0_i32 = arith.constant 0 : i32
    %c0_i32_0 = arith.constant 0 : i32
    %c0_i32_1 = arith.constant 0 : i32
    return %c0_i32, %c0_i32_0 : i32, i32
  }
  func.func @transform_4(%arg0: i32, %arg1: i32) -> (i32, i32) {
    %c0_i32 = arith.constant 0 : i32
    %c0_i32_0 = arith.constant 0 : i32
    %c0_i32_1 = arith.constant 0 : i32
    return %c0_i32, %c0_i32_0 : i32, i32
  }
  func.func @transform_5(%arg0: i32, %arg1: i32) -> (i32, i32) {
    %c0_i32 = arith.constant 0 : i32
    %c0_i32_0 = arith.constant 0 : i32
    return %arg0, %c0_i32 : i32, i32
  }
}

</mosaic_0001>

<llo_original>
// kernel: tpu_custom_call.1
$region0: #{tpu_custom_call.1}
  #allocation0 [shape = 'u32[]', space=smem, size = 0x4, offset = 0x4, fixed_abs, tag = 'smem constant byte address 0x4 - core index']
  #allocation1 [shape = 'u32[72,128]{1,0:T(1,128)}', space=vmem, size = 0x9000, scoped, tag = 'internal scratch']
  #allocation2 [shape = 'f32[16,128]{1,0:T(8,128)}', space=vmem, size = 0x2000, scoped, tag = 'scratch operand']
  %s0 = inlined_call_operand.hbm [shape: bf16[16,128], index: 0, kind: input, shape index: {}]
  %s1 = inlined_call_operand.hbm [shape: bf16[128,128], index: 1, kind: input, shape index: {}]
  %s2 = inlined_call_operand.vmem [shape: f32[1,128], index: 2, kind: input, shape index: {}]
  %s3 = inlined_call_operand.hbm [shape: bf16[128,128], index: 3, kind: input, shape index: {}]
  %s4 = inlined_call_operand.vmem [shape: f32[1,128], index: 4, kind: input, shape index: {}]
  %s5 = inlined_call_operand.hbm [shape: f32[16,128], index: 5, kind: output, shape index: {}]
  %s6 = sld [smem:[#allocation0]]
  $region50: #{tpu_custom_call.1} parent=0
    _
  %s8 = ssub.s32 1, %s6
  %s9 = scalar_select 0, %s8, %s6
  $region1: #{tpu_custom_call.1} parent=0
    #allocation3 [shape = 'u8[4096]{0}', space=vmem, size = 0x1000, scoped, tag = 'input window, operand 0, single buffered']
    #allocation4 [shape = 's32[1]{0}', space=sflag, size = 0x4, scoped, tag = 'scoped memory for tpu_custom_call.1']
    #allocation5 [shape = 's32[1]{0}', space=sflag, size = 0x4, scoped, tag = 'scoped memory for tpu_custom_call.1']
    #allocation6 [shape = 'u8[32768]{0}', space=vmem, size = 0x8000, scoped, tag = 'input window, operand 1, single buffered']
    #allocation7 [shape = 's32[1]{0}', space=sflag, size = 0x4, scoped, tag = 'scoped memory for tpu_custom_call.1']
    #allocation8 [shape = 'u8[32768]{0}', space=vmem, size = 0x8000, scoped, tag = 'input window, operand 3, single buffered']
    #allocation9 [shape = 'u8[8192]{0}', space=vmem, size = 0x2000, scoped, tag = 'output window, operand 0, single buffered']
    %10 = vsyncpa [#allocation4], 0
    %11 = vsyncpa [#allocation7], 0
    %12 = vsyncpa [#allocation5], 0
    // Predicated region
    $region2: #{tpu_custom_call.1} parent=1 // pred_check
      _
    $region3: #{tpu_custom_call.1} parent=1 // pred_check_branch
      %14 = sbr.rel (0) target = $region5
    $region4: #{tpu_custom_call.1} parent=1 // pred_region
      %16 = vsyncadd [#allocation4], 0
      %s17 = sshll.u32 %s0, 4
      %s18 = int_to_ptr.hbm [resolvable:$true] %s17
      %s19 = sshll.u32 [#allocation3], 4
      %s20 = int_to_ptr.vmem [resolvable:$true] %s19
      %25 = dma.hbm_to_vmem [thread:$0]  %s18, 128, %s20, [#allocation4], 64, 64, 4
    $region5: #{tpu_custom_call.1} parent=1 // pred_fallthru
      _
    // Predicated region
    $region6: #{tpu_custom_call.1} parent=1 // pred_check
      _
    $region7: #{tpu_custom_call.1} parent=1 // pred_check_branch
      %27 = sbr.rel (0) target = $region9
    $region8: #{tpu_custom_call.1} parent=1 // pred_region
      %29 = vsyncadd [#allocation7], 0
      %s30 = sshll.u32 %s1, 4
      %s31 = int_to_ptr.hbm [resolvable:$true] %s30
      %s32 = sshll.u32 [#allocation6], 4
      %s33 = int_to_ptr.vmem [resolvable:$true] %s32
      %38 = dma.hbm_to_vmem [thread:$0]  %s31, 1024, %s33, [#allocation7], 64, 64, 4
    $region9: #{tpu_custom_call.1} parent=1 // pred_fallthru
      _
    // Predicated region
    $region10: #{tpu_custom_call.1} parent=1 // pred_check
      _
    $region11: #{tpu_custom_call.1} parent=1 // pred_check_branch
      %40 = sbr.rel (0) target = $region13
    $region12: #{tpu_custom_call.1} parent=1 // pred_region
      _
    $region13: #{tpu_custom_call.1} parent=1 // pred_fallthru
      _
    // Predicated region
    $region14: #{tpu_custom_call.1} parent=1 // pred_check
      _
    $region15: #{tpu_custom_call.1} parent=1 // pred_check_branch
      %42 = sbr.rel (0) target = $region17
    $region16: #{tpu_custom_call.1} parent=1 // pred_region
      %44 = vsyncadd [#allocation7], 0
      %s45 = sshll.u32 %s3, 4
      %s46 = int_to_ptr.hbm [resolvable:$true] %s45
      %s47 = sshll.u32 [#allocation8], 4
      %s48 = int_to_ptr.vmem [resolvable:$true] %s47
      %53 = dma.hbm_to_vmem [thread:$0]  %s46, 1024, %s48, [#allocation7], 64, 64, 4
    $region17: #{tpu_custom_call.1} parent=1 // pred_fallthru
      _
    // Predicated region
    $region18: #{tpu_custom_call.1} parent=1 // pred_check
      _
    $region19: #{tpu_custom_call.1} parent=1 // pred_check_branch
      %55 = sbr.rel (0) target = $region21
    $region20: #{tpu_custom_call.1} parent=1 // pred_region
      _
    $region21: #{tpu_custom_call.1} parent=1 // pred_fallthru
      _
    // Predicated region
    $region22: #{tpu_custom_call.1} parent=1 // pred_check
      _
    $region23: #{tpu_custom_call.1} parent=1 // pred_check_branch
      %57 = sbr.rel (0) target = $region25
    $region24: #{tpu_custom_call.1} parent=1 // pred_region
      %59 = dma.done [#allocation4], 128
    $region25: #{tpu_custom_call.1} parent=1 // pred_fallthru
      _
    // Predicated region
    $region26: #{tpu_custom_call.1} parent=1 // pred_check
      _
    $region27: #{tpu_custom_call.1} parent=1 // pred_check_branch
      %61 = sbr.rel (0) target = $region29
    $region28: #{tpu_custom_call.1} parent=1 // pred_region
      %63 = dma.done [#allocation7], 1024
    $region29: #{tpu_custom_call.1} parent=1 // pred_fallthru
      _
    // Predicated region
    $region30: #{tpu_custom_call.1} parent=1 // pred_check
      _
    $region31: #{tpu_custom_call.1} parent=1 // pred_check_branch
      %65 = sbr.rel (0) target = $region33
    $region32: #{tpu_custom_call.1} parent=1 // pred_region
      %67 = dma.done [#allocation7], 1024
    $region33: #{tpu_custom_call.1} parent=1 // pred_fallthru
      _
    %p68 = scmp.eq.s32.totalorder 0, 0
    // Predicated region
    $region34: #{tpu_custom_call.1} parent=1 // pred_check
      %p69 = pneg %p68
    $region35: #{tpu_custom_call.1} parent=1 // pred_check_branch
      %71 = sbr.rel (%p69) target = $region37
    $region36: #{tpu_custom_call.1} parent=1 // pred_region
      %72 = vst [vmem:[#allocation2] sm:$0xff] 0.0
      %73 = vst [vmem:[#allocation2 + $0x8] sm:$0xff] 0.0
    $region37: #{tpu_custom_call.1} parent=1 // pred_fallthru
      _
    %v74 = vld [vmem:[#allocation2] sm:$0xff]
    %v75 = vld [vmem:[#allocation2 + $0x8] sm:$0xff]
    %v76 = vld [vmem:[#allocation3] sm:$0xf]
    %v77 = vld [vmem:[#allocation3 + $0x4] sm:$0xf]
    %v78 = vld [vmem:[#allocation6] sm:$0xf]
    %v79 = vld [vmem:[#allocation6 + $0x4] sm:$0xf]
    %v80 = vld [vmem:[#allocation6 + $0x8] sm:$0xf]
    %v81 = vld [vmem:[#allocation6 + $0xc] sm:$0xf]
    %v82 = vld [vmem:[#allocation6 + $0x10] sm:$0xf]
    %v83 = vld [vmem:[#allocation6 + $0x14] sm:$0xf]
    %v84 = vld [vmem:[#allocation6 + $0x18] sm:$0xf]
    %v85 = vld [vmem:[#allocation6 + $0x1c] sm:$0xf]
    %v86 = vld [vmem:[#allocation6 + $0x20] sm:$0xf]
    %v87 = vld [vmem:[#allocation6 + $0x24] sm:$0xf]
    %v88 = vld [vmem:[#allocation6 + $0x28] sm:$0xf]
    %v89 = vld [vmem:[#allocation6 + $0x2c] sm:$0xf]
    %v90 = vld [vmem:[#allocation6 + $0x30] sm:$0xf]
    %v91 = vld [vmem:[#allocation6 + $0x34] sm:$0xf]
    %v92 = vld [vmem:[#allocation6 + $0x38] sm:$0xf]
    %v93 = vld [vmem:[#allocation6 + $0x3c] sm:$0xf]
    %v96 = vunpack.c.l.b16 %v76
    %v97 = vunpack.c.l.b16 %v77
    %v98 = vpack.c.b16 %v97, %v96
    %v116 = vunpack.c.l.b16 %v78
    %v117 = vunpack.c.l.b16 %v79
    %v118 = vunpack.c.l.b16 %v80
    %v119 = vunpack.c.l.b16 %v81
    %v120 = vunpack.c.l.b16 %v82
    %v121 = vunpack.c.l.b16 %v83
    %v122 = vunpack.c.l.b16 %v84
    %v123 = vunpack.c.l.b16 %v85
    %v124 = vunpack.c.l.b16 %v86
    %v125 = vunpack.c.l.b16 %v87
    %v126 = vunpack.c.l.b16 %v88
    %v127 = vunpack.c.l.b16 %v89
    %v128 = vunpack.c.l.b16 %v90
    %v129 = vunpack.c.l.b16 %v91
    %v130 = vunpack.c.l.b16 %v92
    %v131 = vunpack.c.l.b16 %v93
    %v132 = vpack.c.b16 %v117, %v116
    %v133 = vpack.c.b16 %v119, %v118
    %v134 = vpack.c.b16 %v121, %v120
    %v135 = vpack.c.b16 %v123, %v122
    %v136 = vpack.c.b16 %v125, %v124
    %v137 = vpack.c.b16 %v127, %v126
    %v138 = vpack.c.b16 %v129, %v128
    %v139 = vpack.c.b16 %v131, %v130
    %148 = vmatpush.bf16.msra.mxu0 %v139
    %149 = vmatpush.bf16.msra.mxu0 %v138
    %150 = vmatpush.bf16.msra.mxu0 %v137
    %151 = vmatpush.bf16.msra.mxu0 %v136
    %152 = vmatpush.bf16.msra.mxu0 %v135
    %153 = vmatpush.bf16.msra.mxu0 %v134
    %154 = vmatpush.bf16.msra.mxu0 %v133
    %155 = vmatpush.bf16.msra.mxu0 %v132
    %156 = vmatmul.bf16.gmra.mxu0 %v98
    %v157 = vpop.f32.mrf.mxu0
    %v158 = vadd.f32 0.0, %v157
    %v159 = vpop.f32.mrf.mxu0
    %v160 = vadd.f32 0.0, %v159
    %161 = vdwg.mxu0
    %v162 = vadd.f32 %v74, %v158
    %v163 = vadd.f32 %v75, %v160
    %164 = vst [vmem:[#allocation2] sm:$0xff] %v162
    %165 = vst [vmem:[#allocation2 + $0x8] sm:$0xff] %v163
    // Predicated region
    $region38: #{tpu_custom_call.1} parent=1 // pred_check
      %p166 = pneg %p68
    $region39: #{tpu_custom_call.1} parent=1 // pred_check_branch
      %168 = sbr.rel (%p166) target = $region41
    $region40: #{tpu_custom_call.1} parent=1 // pred_region
      %v169 = vld [vmem:[#allocation2] sm:$0xff]
      %v170 = vld [vmem:[#allocation2 + $0x8] sm:$0xff]
      %v171 = vld [vmem:[%s2] sm:$0x1]
      %v173 = vperm.slane %v171, 0
      %v175 = vadd.f32 %v169, %v173
      %v176 = vadd.f32 %v170, %v173
      %v177 = vmax.f32 %v175, 0.0
      %v178 = vmax.f32 %v176, 0.0
      %v179 = vpack.c.bf16 %v178, %v177
      %v180 = vld [vmem:[#allocation8] sm:$0xf]
      %v181 = vld [vmem:[#allocation8 + $0x4] sm:$0xf]
      %v182 = vld [vmem:[#allocation8 + $0x8] sm:$0xf]
      %v183 = vld [vmem:[#allocation8 + $0xc] sm:$0xf]
      %v184 = vld [vmem:[#allocation8 + $0x10] sm:$0xf]
      %v185 = vld [vmem:[#allocation8 + $0x14] sm:$0xf]
      %v186 = vld [vmem:[#allocation8 + $0x18] sm:$0xf]
      %v187 = vld [vmem:[#allocation8 + $0x1c] sm:$0xf]
      %v188 = vld [vmem:[#allocation8 + $0x20] sm:$0xf]
      %v189 = vld [vmem:[#allocation8 + $0x24] sm:$0xf]
      %v190 = vld [vmem:[#allocation8 + $0x28] sm:$0xf]
      %v191 = vld [vmem:[#allocation8 + $0x2c] sm:$0xf]
      %v192 = vld [vmem:[#allocation8 + $0x30] sm:$0xf]
      %v193 = vld [vmem:[#allocation8 + $0x34] sm:$0xf]
      %v194 = vld [vmem:[#allocation8 + $0x38] sm:$0xf]
      %v195 = vld [vmem:[#allocation8 + $0x3c] sm:$0xf]
      %v196 = vld [vmem:[%s4] sm:$0x1]
      %v198 = vperm.slane %v196, 0
      %v216 = vunpack.c.l.b16 %v180
      %v217 = vunpack.c.l.b16 %v181
      %v218 = vunpack.c.l.b16 %v182
      %v219 = vunpack.c.l.b16 %v183
      %v220 = vunpack.c.l.b16 %v184
      %v221 = vunpack.c.l.b16 %v185
      %v222 = vunpack.c.l.b16 %v186
      %v223 = vunpack.c.l.b16 %v187
      %v224 = vunpack.c.l.b16 %v188
      %v225 = vunpack.c.l.b16 %v189
      %v226 = vunpack.c.l.b16 %v190
      %v227 = vunpack.c.l.b16 %v191
      %v228 = vunpack.c.l.b16 %v192
      %v229 = vunpack.c.l.b16 %v193
      %v230 = vunpack.c.l.b16 %v194
      %v231 = vunpack.c.l.b16 %v195
      %v232 = vpack.c.b16 %v217, %v216
      %v233 = vpack.c.b16 %v219, %v218
      %v234 = vpack.c.b16 %v221, %v220
      %v235 = vpack.c.b16 %v223, %v222
      %v236 = vpack.c.b16 %v225, %v224
      %v237 = vpack.c.b16 %v227, %v226
      %v238 = vpack.c.b16 %v229, %v228
      %v239 = vpack.c.b16 %v231, %v230
      %248 = vmatpush.bf16.msra.mxu0 %v239
      %249 = vmatpush.bf16.msra.mxu0 %v238
      %250 = vmatpush.bf16.msra.mxu0 %v237
      %251 = vmatpush.bf16.msra.mxu0 %v236
      %252 = vmatpush.bf16.msra.mxu0 %v235
      %253 = vmatpush.bf16.msra.mxu0 %v234
      %254 = vmatpush.bf16.msra.mxu0 %v233
      %255 = vmatpush.bf16.msra.mxu0 %v232
      %256 = vmatmul.bf16.gmra.mxu0 %v179
      %v257 = vpop.f32.mrf.mxu0
      %v258 = vadd.f32 %v198, %v257
      %v259 = vpop.f32.mrf.mxu0
      %v260 = vadd.f32 %v198, %v259
      %261 = vdwg.mxu0
      %262 = vst [vmem:[#allocation9] sm:$0xff] %v258
      %263 = vst [vmem:[#allocation9 + $0x8] sm:$0xff] %v260
    $region41: #{tpu_custom_call.1} parent=1 // pred_fallthru
      _
    // Predicated region
    $region42: #{tpu_custom_call.1} parent=1 // pred_check
      _
    $region43: #{tpu_custom_call.1} parent=1 // pred_check_branch
      %265 = sbr.rel (0) target = $region45
    $region44: #{tpu_custom_call.1} parent=1 // pred_region
      %267 = vsyncadd [#allocation5], 0
      %s268 = sshll.u32 [#allocation9], 4
      %s269 = int_to_ptr.vmem [resolvable:$true] %s268
      %s270 = sshll.u32 %s5, 4
      %s271 = int_to_ptr.hbm [resolvable:$true] %s270
      %276 = dma.vmem_to_hbm [thread:$0]  %s269, 256, %s271, [#allocation5], 128, 128, 8
    $region45: #{tpu_custom_call.1} parent=1 // pred_fallthru
      _
    // Predicated region
    $region46: #{tpu_custom_call.1} parent=1 // pred_check
      _
    $region47: #{tpu_custom_call.1} parent=1 // pred_check_branch
      %278 = sbr.rel (0) target = $region49
    $region48: #{tpu_custom_call.1} parent=1 // pred_region
      %280 = dma.done [#allocation5], 256
    $region49: #{tpu_custom_call.1} parent=1 // pred_fallthru
      _
    %281 = vsyncpa [#allocation4], 1
    %282 = vsyncpa [#allocation7], 1
    %283 = vsyncpa [#allocation5], 1

</llo_original>
